<compile_context>
chip_gen: v5e
topology: v5e:2x2
jax: 0.10.0
libtpu: 0.0.40
codegen_flags: <defaults>
</compile_context>

<pallas_src>
import functools

import jax
import jax.numpy as jnp
from jax.experimental import pallas as pl
from jax.experimental.pallas import tpu as pltpu


# --------------------------------------------------------------------------------------
# Kernel bodies
# --------------------------------------------------------------------------------------

def _accumulate(w_ref, embed_ref, acc_ref, *, seq_tile, seq_len):
    """Accumulate (TB, 1) partial pre-activations over the current L tile (MXU path)."""
    li = pl.program_id(1)

    @pl.when(li == 0)
    def _init():
        acc_ref[...] = jnp.zeros_like(acc_ref)

    tb, _, d = embed_ref.shape
    w3 = w_ref[...].reshape(1, 1, d)                     # (1, 1, D) f32, VMEM-resident

    def step(emb):
        # MXU: sum over the sequence tile.  bf16/f32 input, f32 accumulation.
        ones = jnp.ones((tb, 1, seq_tile), dtype=emb.dtype)
        partial = jnp.einsum("bql,bld->bqd", ones, emb,
                             preferred_element_type=jnp.float32)      # (TB, 1, D)
        # Fold the (1/L-scaled) classifier weight per tile -> (TB, 1) partial logits.
        acc_ref[...] += jnp.sum(partial * w3, axis=2)

    rem = seq_len % seq_tile
    if rem == 0:
        step(embed_ref[...])
    else:
        n_l = -(-seq_len // seq_tile)

        @pl.when(li < n_l - 1)
        def _full():
            step(embed_ref[...])

        @pl.when(li == n_l - 1)
        def _tail():
            # Ragged last L tile: out-of-range rows hold unspecified data (possibly NaN),
            # so they must be zeroed with a select — a 0 entry in `ones` is not enough.
            emb = embed_ref[...]
            row = jax.lax.broadcasted_iota(jnp.int32, (seq_tile, 1), 0)
            keep = (row < rem)[None]                      # (1, TL, 1), broadcast over TB, D
            step(jnp.where(keep, emb, jnp.zeros((), emb.dtype)))


def _finalize(b_ref, acc_ref):
    """(TB, 1) sigmoid of accumulated pre-activation + bias (bias lives in SMEM)."""
    return jax.nn.sigmoid(acc_ref[...] + b_ref[0])


def _infer_kernel(w_ref, b_ref, embed_ref, probs_ref, acc_ref, *, seq_tile, seq_len):
    _accumulate(w_ref, embed_ref, acc_ref, seq_tile=seq_tile, seq_len=seq_len)

    @pl.when(pl.program_id(1) == pl.num_programs(1) - 1)
    def _():
        probs_ref[...] = _finalize(b_ref, acc_ref)


def _train_kernel(w_ref, b_ref, embed_ref, labels_ref, probs_ref, lossv_ref, acc_ref,
                  *, seq_tile, seq_len):
    _accumulate(w_ref, embed_ref, acc_ref, seq_tile=seq_tile, seq_len=seq_len)

    @pl.when(pl.program_id(1) == pl.num_programs(1) - 1)
    def _():
        x = _finalize(b_ref, acc_ref)                     # (TB, 1) sigmoid "logits"
        probs_ref[...] = x
        y = labels_ref[...]                               # (TB, 1)
        # BCEWithLogitsLoss applied to the *sigmoid output* — faithful to the reference quirk.
        lossv_ref[...] = (jnp.maximum(x, 0.0) - x * y
                          + jnp.log1p(jnp.exp(-jnp.abs(x))))


# --------------------------------------------------------------------------------------
# Generation-aware tile selection
# --------------------------------------------------------------------------------------

def _vmem_capacity_bytes():
    try:
        info = pltpu.get_tpu_info()
        cap = getattr(info, "vmem_capacity_bytes", None)
        if cap:
            return int(cap)
    except Exception:
        pass
    return 64 * 1024 * 1024                               # conservative (v7x-sized) fallback


def _pick_batch_tile(B, D, budget_bytes):
    """Batch tile: <=128 rows; keep the transient (TB,1,D) f32 MXU partial within budget."""
    tb = min(B, 128)
    while tb > 8 and tb * 8 * D * 4 > budget_bytes:       # 8x: sublane padding of the unit dim
        tb //= 2
    return max(tb, 1)


def _pick_seq_tile(L, tb, d, itemsize, target_bytes):
    """Largest L tile whose (tb, tl, d) block stays under target_bytes.

    Prefer an exact divisor of L (no tail masking); for awkward L fall back to an aligned
    non-divisor tile — the kernel zero-masks the ragged tail tile."""
    align = max(8, 32 // max(1, itemsize))                # 8 (f32) / 16 (bf16) / 32 (i8)
    row_bytes = max(1, tb * d * itemsize)
    max_rows = max(align, target_bytes // row_bytes)
    if L <= max_rows:
        return L                                          # whole sequence in one block
    best = 0
    t = align
    while t <= max_rows:
        if L % t == 0:
            best = t
        t += align
    if best >= max(align, max_rows // 4):
        return best                                       # clean divisor, near the target
    return max(align, (max_rows // align) * align)        # ragged: masked tail in-kernel


# --------------------------------------------------------------------------------------
# Wrapper
# --------------------------------------------------------------------------------------

def baseline_forward(embed, w, b, labels=None, *, max_block_bytes=None):
    """embed: (B, L, D) f32/bf16; w: (1, D); b: (1,); labels: optional (B,) float/int."""
    B, L, D = embed.shape

    # Fold the 1/L of the sequence mean into the classifier weight (tiny host-side op).
    w_scaled = (w.astype(jnp.float32) / jnp.float32(L)).reshape(1, D)
    b_smem = b.astype(jnp.float32).reshape(1)

    vmem_cap = _vmem_capacity_bytes()
    target_block = max_block_bytes or max(4 * 1024 * 1024, vmem_cap // 8)
    vmem_limit = int(vmem_cap * 0.7)

    tb = _pick_batch_tile(B, D, target_block)
    tl = _pick_seq_tile(L, tb, D, embed.dtype.itemsize, target_block)
    nb = -(-B // tb)
    nl = -(-L // tl)
    grid = (nb, nl)

    w_spec = pl.BlockSpec((1, D), lambda bi, li: (0, 0))          # resident across the grid
    b_spec = pl.BlockSpec(memory_space=pltpu.MemorySpace.SMEM)    # scalar bias in SMEM
    embed_spec = pl.BlockSpec((tb, tl, D), lambda bi, li: (bi, li, 0))
    col_spec = pl.BlockSpec((tb, 1), lambda bi, li: (bi, 0))      # per-example column outputs

    scratch = [pltpu.VMEM((tb, 1), jnp.float32)]                  # running partial logits
    cparams = pltpu.CompilerParams(
        dimension_semantics=("parallel", "arbitrary"),            # batch parallel, L reduction
        vmem_limit_bytes=vmem_limit,
    )

    if labels is None:
        probs = pl.pallas_call(
            functools.partial(_infer_kernel, seq_tile=tl, seq_len=L),
            out_shape=jax.ShapeDtypeStruct((B, 1), jnp.float32),
            grid=grid,
            in_specs=[w_spec, b_spec, embed_spec],
            out_specs=col_spec,
            scratch_shapes=scratch,
            compiler_params=cparams,
        )(w_scaled, b_smem, embed)
        return probs[:, 0]                                        # (B,)

    labels_col = labels.astype(jnp.float32).reshape(B, 1)
    probs, loss_terms = pl.pallas_call(
        functools.partial(_train_kernel, seq_tile=tl, seq_len=L),
        out_shape=(
            jax.ShapeDtypeStruct((B, 1), jnp.float32),            # sigmoid outputs
            jax.ShapeDtypeStruct((B, 1), jnp.float32),            # per-example BCE terms
        ),
        grid=grid,
        in_specs=[w_spec, b_spec, embed_spec, col_spec],
        out_specs=(col_spec, col_spec),
        scratch_shapes=scratch,
        compiler_params=cparams,
    )(w_scaled, b_smem, embed, labels_col)

    loss = jnp.mean(loss_terms[:, 0])                             # BCEWithLogitsLoss 'mean'
    return probs[:, 0], loss


# --------------------------------------------------------------------------------------
# Demo / self-check
# --------------------------------------------------------------------------------------

if __name__ == "__main__":
    # Small shapes consistent with the module: batch=2, seq=8, intermediate_dims=32.
    B, L, D = 2, 8, 32
    key = jax.random.PRNGKey(0)
    k_emb, k_w, k_b, k_lab = jax.random.split(key, 4)

    embed = jax.random.normal(k_emb, (B, L, D), jnp.float32)
    w = jax.random.normal(k_w, (1, D), jnp.float32) * (1.0 / jnp.sqrt(D))
    bias = jax.random.normal(k_b, (1,), jnp.float32) * 0.01
    labels = (jax.random.uniform(k_lab, (B,)) > 0.5).astype(jnp.float32)

    def ref_forward(e, ww, bb, lab=None):
        probs = jax.nn.sigmoid(jnp.mean(e, axis=1) @ ww.T + bb)[:, 0]
        if lab is None:
            return probs
        x, y = probs, lab
        loss = jnp.mean(jnp.maximum(x, 0.0) - x * y + jnp.log1p(jnp.exp(-jnp.abs(x))))
        return probs, loss

    # Training path (probabilities + loss).
    logits, loss = baseline_forward(embed, w, bias, labels)
    jax.block_until_ready((logits, loss))
    probs_ref, loss_ref = ref_forward(embed, w, bias, labels)
    assert jnp.allclose(logits, probs_ref, atol=1e-5), (logits, probs_ref)
    assert jnp.allclose(loss, loss_ref, atol=1e-5), (loss, loss_ref)

    # Inference path: no labels DMA, no loss math.
    logits_only = baseline_forward(embed, w, bias)
    jax.block_until_ready(logits_only)
    assert jnp.allclose(logits_only, probs_ref, atol=1e-5)

    # bf16 embeddings stay bf16 on the HBM wire and feed the MXU directly.
    logits_bf16 = baseline_forward(embed.astype(jnp.bfloat16), w, bias)
    jax.block_until_ready(logits_bf16)
    assert jnp.allclose(logits_bf16, probs_ref, atol=2e-2)

    # Multi-L-tile accumulation and the ragged-tail (masked) path, forced via a tiny block
    # budget: L=24 divides cleanly into 8-row tiles, L=20 exercises the masked last tile.
    for Lt in (24, 20):
        e2 = jax.random.normal(k_emb, (4, Lt, 128), jnp.float32)
        w2 = jax.random.normal(k_w, (1, 128), jnp.float32) * 0.05
        out2 = baseline_forward(e2, w2, bias, max_block_bytes=4096)
        jax.block_until_ready(out2)
        assert jnp.allclose(out2, ref_forward(e2, w2, bias), atol=1e-5), Lt

    print("KERNEL_OK")
</pallas_src>

<mosaic_0001>
module attributes {stable_mosaic.version = 11 : i64} {
  func.func @_train_kernel(%arg0: i32, %arg1: i32, %arg2: memref<1x32xf32, #tpu.memory_space<vmem>>, %arg3: memref<1xf32, #tpu.memory_space<smem>>, %arg4: memref<2x8x32xf32, #tpu.memory_space<vmem>>, %arg5: memref<2x1xf32, #tpu.memory_space<vmem>>, %arg6: memref<2x1xf32, #tpu.memory_space<vmem>>, %arg7: memref<2x1xf32, #tpu.memory_space<vmem>>, %arg8: memref<2x1xf32, #tpu.memory_space<vmem>>) attributes {dimension_semantics = [#tpu.dimension_semantics<parallel>, #tpu.dimension_semantics<arbitrary>], iteration_bounds = array<i64: 1, 1>, scalar_prefetch = 0 : i64, scratch_operands = 1 : i64, tpu.core_type = #tpu.core_type<tc>, window_params = [{pipeline_mode = #tpu.pipeline_mode<synchronous>, transform_indices = @transform_0, window_bounds = array<i64: 1, 32>}, {transform_indices = @transform_1, window_bounds = array<i64: 1>}, {transform_indices = @transform_2, window_bounds = array<i64: 2, 8, 32>}, {transform_indices = @transform_3, window_bounds = array<i64: 2, 1>}, {transform_indices = @transform_4, window_bounds = array<i64: 2, 1>}, {transform_indices = @transform_5, window_bounds = array<i64: 2, 1>}]} {
    %c0_i32 = arith.constant 0 : i32
    %0 = arith.cmpi eq, %arg1, %c0_i32 : i32
    %1 = arith.extui %0 : i1 to i32
    %c0_i32_0 = arith.constant 0 : i32
    %2 = arith.cmpi ne, %1, %c0_i32_0 : i32
    scf.if %2 {
      %cst_13 = arith.constant 0.000000e+00 : f32
      %17 = vector.broadcast %cst_13 : f32 to vector<2x1xf32>
      %c0_14 = arith.constant 0 : index
      %c0_15 = arith.constant 0 : index
      %18 = vector.load %arg8[%c0_14, %c0_15] : memref<2x1xf32, #tpu.memory_space<vmem>>, vector<2x1xf32>
      tpu.vector_store %arg8[%c0_14, %c0_15], %17 {strides = array<i32>} : memref<2x1xf32, #tpu.memory_space<vmem>>, vector<2x1xf32>,
    } else {
    }
    %c0 = arith.constant 0 : index
    %c0_1 = arith.constant 0 : index
    %3 = vector.load %arg2[%c0, %c0_1] : memref<1x32xf32, #tpu.memory_space<vmem>>, vector<1x32xf32>
    %4 = vector.shape_cast %3 : vector<1x32xf32> to vector<1x1x32xf32>
    %c0_2 = arith.constant 0 : index
    %c0_3 = arith.constant 0 : index
    %c0_4 = arith.constant 0 : index
    %5 = vector.load %arg4[%c0_2, %c0_3, %c0_4] : memref<2x8x32xf32, #tpu.memory_space<vmem>>, vector<2x8x32xf32>
    %cst = arith.constant 1.000000e+00 : f32
    %6 = vector.broadcast %cst : f32 to vector<2x1x8xf32>
    "tpu.trace_start"() <{level = 10 : i32, message = "bql,bld->bqd"}> : () -> ()
    %cst_5 = arith.constant dense<0.000000e+00> : vector<2x1x32xf32>
    %7 = tpu.matmul %6, %5, %cst_5 {dimension_numbers = #tpu.dot_dimension_numbers<[2], [1], [1], [2], [0, 0, 0, 1, 1, 2], [0], [0]>} : vector<2x1x8xf32>, vector<2x8x32xf32>, vector<2x1x32xf32> -> vector<2x1x32xf32>
    "tpu.trace_stop"() : () -> ()
    %c0_6 = arith.constant 0 : index
    %c0_7 = arith.constant 0 : index
    %8 = vector.load %arg8[%c0_6, %c0_7] : memref<2x1xf32, #tpu.memory_space<vmem>>, vector<2x1xf32>
    %9 = vector.broadcast %4 : vector<1x1x32xf32> to vector<2x1x32xf32>
    %10 = arith.mulf %7, %9 : vector<2x1x32xf32>
    %cst_8 = arith.constant dense<0.000000e+00> : vector<2x1xf32>
    %11 = vector.multi_reduction <add>, %10, %cst_8 [2] : vector<2x1x32xf32> to vector<2x1xf32>
    %12 = arith.addf %8, %11 : vector<2x1xf32>
    %c0_9 = arith.constant 0 : index
    %c0_10 = arith.constant 0 : index
    %13 = vector.load %arg8[%c0_9, %c0_10] : memref<2x1xf32, #tpu.memory_space<vmem>>, vector<2x1xf32>
    tpu.vector_store %arg8[%c0_9, %c0_10], %12 {strides = array<i32>} : memref<2x1xf32, #tpu.memory_space<vmem>>, vector<2x1xf32>,
    %c0_i32_11 = arith.constant 0 : i32
    %14 = arith.cmpi eq, %arg1, %c0_i32_11 : i32
    %15 = arith.extui %14 : i1 to i32
    %c0_i32_12 = arith.constant 0 : i32
    %16 = arith.cmpi ne, %15, %c0_i32_12 : i32
    scf.if %16 {
      %c0_13 = arith.constant 0 : index
      %c0_14 = arith.constant 0 : index
      %17 = vector.load %arg8[%c0_13, %c0_14] : memref<2x1xf32, #tpu.memory_space<vmem>>, vector<2x1xf32>
      %c0_15 = arith.constant 0 : index
      %18 = memref.load %arg3[%c0_15] : memref<1xf32, #tpu.memory_space<smem>>
      %19 = vector.broadcast %18 : f32 to vector<2x1xf32>
      %20 = arith.addf %17, %19 : vector<2x1xf32>
      %21 = arith.negf %20 : vector<2x1xf32>
      %22 = math.exp %21 : vector<2x1xf32>
      %cst_16 = arith.constant 1.000000e+00 : f32
      %23 = vector.broadcast %cst_16 : f32 to vector<2x1xf32>
      %24 = arith.addf %23, %22 : vector<2x1xf32>
      %25 = arith.divf %23, %24 : vector<2x1xf32>
      %c0_17 = arith.constant 0 : index
      %c0_18 = arith.constant 0 : index
      %26 = vector.load %arg6[%c0_17, %c0_18] : memref<2x1xf32, #tpu.memory_space<vmem>>, vector<2x1xf32>
      tpu.vector_store %arg6[%c0_17, %c0_18], %25 {strides = array<i32>} : memref<2x1xf32, #tpu.memory_space<vmem>>, vector<2x1xf32>,
      %c0_19 = arith.constant 0 : index
      %c0_20 = arith.constant 0 : index
      %27 = vector.load %arg5[%c0_19, %c0_20] : memref<2x1xf32, #tpu.memory_space<vmem>>, vector<2x1xf32>
      %cst_21 = arith.constant 0.000000e+00 : f32
      %28 = vector.broadcast %cst_21 : f32 to vector<2x1xf32>
      %29 = arith.maximumf %25, %28 : vector<2x1xf32>
      %30 = arith.mulf %25, %27 : vector<2x1xf32>
      %31 = arith.subf %29, %30 : vector<2x1xf32>
      %32 = math.absf %25 : vector<2x1xf32>
      %cst_22 = arith.constant 0.000000e+00 : f32
      %33 = vector.broadcast %cst_22 : f32 to vector<2x1xf32>
      %34 = arith.subf %33, %32 : vector<2x1xf32>
      %35 = math.exp %34 : vector<2x1xf32>
      %36 = math.log1p %35 : vector<2x1xf32>
      %37 = arith.addf %31, %36 : vector<2x1xf32>
      %c0_23 = arith.constant 0 : index
      %c0_24 = arith.constant 0 : index
      %38 = vector.load %arg7[%c0_23, %c0_24] : memref<2x1xf32, #tpu.memory_space<vmem>>, vector<2x1xf32>
      tpu.vector_store %arg7[%c0_23, %c0_24], %37 {strides = array<i32>} : memref<2x1xf32, #tpu.memory_space<vmem>>, vector<2x1xf32>,
    } else {
    }
    return
  }
  func.func @transform_0(%arg0: i32, %arg1: i32) -> (i32, i32) {
    %c0_i32 = arith.constant 0 : i32
    %c0_i32_0 = arith.constant 0 : i32
    %c0_i32_1 = arith.constant 0 : i32
    return %c0_i32, %c0_i32_0 : i32, i32
  }
  func.func @transform_1(%arg0: i32, %arg1: i32) -> i32 {
    %c0_i32 = arith.constant 0 : i32
    %c0_i32_0 = arith.constant 0 : i32
    return %c0_i32 : i32
  }
  func.func @transform_2(%arg0: i32, %arg1: i32) -> (i32, i32, i32) {
    %c0_i32 = arith.constant 0 : i32
    %c0_i32_0 = arith.constant 0 : i32
    return %arg0, %arg1, %c0_i32 : i32, i32, i32
  }
  func.func @transform_3(%arg0: i32, %arg1: i32) -> (i32, i32) {
    %c0_i32 = arith.constant 0 : i32
    %c0_i32_0 = arith.constant 0 : i32
    return %arg0, %c0_i32 : i32, i32
  }
  func.func @transform_4(%arg0: i32, %arg1: i32) -> (i32, i32) {
    %c0_i32 = arith.constant 0 : i32
    %c0_i32_0 = arith.constant 0 : i32
    return %arg0, %c0_i32 : i32, i32
  }
  func.func @transform_5(%arg0: i32, %arg1: i32) -> (i32, i32) {
    %c0_i32 = arith.constant 0 : i32
    %c0_i32_0 = arith.constant 0 : i32
    return %arg0, %c0_i32 : i32, i32
  }
}

</mosaic_0001>

<llo_original>
// kernel: tpu_custom_call.1
$region0: #{tpu_custom_call.1}
  #allocation0 [shape = 'u32[]', space=smem, size = 0x4, offset = 0x4, fixed_abs, tag = 'smem constant byte address 0x4 - core index']
  #allocation1 [shape = 'u32[72,128]{1,0:T(1,128)}', space=vmem, size = 0x9000, scoped, tag = 'internal scratch']
  #allocation2 [shape = 'f32[2,1]{1,0:T(2,128)}', space=vmem, size = 0x400, scoped, tag = 'scratch operand']
  #allocation3 [shape = 'f32[1]{0:T(128)S(6)}', space=smem, size = 0x200, scoped, tag = 'scoped memory for tpu_custom_call.1']
  %s0 = inlined_call_operand.vmem [shape: f32[1,32], index: 0, kind: input, shape index: {}]
  %s1 = inlined_call_operand.<no memory space> [shape: f32[1], index: 1, kind: input, shape index: {}]
  %s2 = inlined_call_operand.hbm [shape: f32[2,8,32], index: 2, kind: input, shape index: {}]
  %s3 = inlined_call_operand.vmem [shape: f32[2,1], index: 3, kind: input, shape index: {}]
  %s4 = inlined_call_operand.vmem [shape: f32[2,1], index: 4, kind: output, shape index: {0}]
  %s5 = inlined_call_operand.vmem [shape: f32[2,1], index: 5, kind: output, shape index: {1}]
  %6 = xla_tuple %s4, %s5
  %s7 = sld [smem:[#allocation0]]
  $region46: #{tpu_custom_call.1} parent=0
    _
  %s9 = ssub.s32 1, %s7
  %s10 = scalar_select 0, %s9, %s7
  %11 = sst [smem:[#allocation3]] %s1
  $region1: #{tpu_custom_call.1} parent=0
    #allocation4 [shape = 'u8[8192]{0}', space=vmem, size = 0x2000, scoped, tag = 'input window, operand 2, single buffered']
    #allocation5 [shape = 's32[1]{0}', space=sflag, size = 0x4, scoped, tag = 'scoped memory for tpu_custom_call.1']
    %12 = vsyncpa [#allocation5], 0
    // Predicated region
    $region2: #{tpu_custom_call.1} parent=1 // pred_check
      _
    $region3: #{tpu_custom_call.1} parent=1 // pred_check_branch
      %14 = sbr.rel (0) target = $region5
    $region4: #{tpu_custom_call.1} parent=1 // pred_region
      _
    $region5: #{tpu_custom_call.1} parent=1 // pred_fallthru
      _
    // Predicated region
    $region6: #{tpu_custom_call.1} parent=1 // pred_check
      _
    $region7: #{tpu_custom_call.1} parent=1 // pred_check_branch
      %16 = sbr.rel (0) target = $region9
    $region8: #{tpu_custom_call.1} parent=1 // pred_region
      _
    $region9: #{tpu_custom_call.1} parent=1 // pred_fallthru
      _
    // Predicated region
    $region10: #{tpu_custom_call.1} parent=1 // pred_check
      _
    $region11: #{tpu_custom_call.1} parent=1 // pred_check_branch
      %18 = sbr.rel (0) target = $region13
    $region12: #{tpu_custom_call.1} parent=1 // pred_region
      %20 = vsyncadd [#allocation5], 0
      %s21 = sshll.u32 %s2, 4
      %s22 = int_to_ptr.hbm [resolvable:$true] %s21
      %s23 = sshll.u32 [#allocation4], 4
      %s24 = int_to_ptr.vmem [resolvable:$true] %s23
      %29 = dma.hbm_to_vmem [thread:$0]  %s22, 256, %s24, [#allocation5], 128, 128, 8
    $region13: #{tpu_custom_call.1} parent=1 // pred_fallthru
      _
    // Predicated region
    $region14: #{tpu_custom_call.1} parent=1 // pred_check
      _
    $region15: #{tpu_custom_call.1} parent=1 // pred_check_branch
      %31 = sbr.rel (0) target = $region17
    $region16: #{tpu_custom_call.1} parent=1 // pred_region
      _
    $region17: #{tpu_custom_call.1} parent=1 // pred_fallthru
      _
    // Predicated region
    $region18: #{tpu_custom_call.1} parent=1 // pred_check
      _
    $region19: #{tpu_custom_call.1} parent=1 // pred_check_branch
      %33 = sbr.rel (0) target = $region21
    $region20: #{tpu_custom_call.1} parent=1 // pred_region
      %35 = dma.done [#allocation5], 256
    $region21: #{tpu_custom_call.1} parent=1 // pred_fallthru
      _
    %p36 = scmp.eq.s32.totalorder 0, 0
    // Predicated region
    $region22: #{tpu_custom_call.1} parent=1 // pred_check
      %p37 = pneg %p36
    $region23: #{tpu_custom_call.1} parent=1 // pred_check_branch
      %39 = sbr.rel (%p37) target = $region25
    $region24: #{tpu_custom_call.1} parent=1 // pred_region
      %vm40 = vcmask 1024
      %41 = vst.msk [vmem:[#allocation2] sm:$0x3] %vm40, 0.0
    $region25: #{tpu_custom_call.1} parent=1 // pred_fallthru
      _
    %v42 = vld [vmem:[%s0] sm:$0x1]
    %v43 = vld [vmem:[#allocation4] sm:$0xff]
    %v44 = vld [vmem:[#allocation4 + $0x8] sm:$0xff]
    %vm45 = vcmask 64512
    %v47 = vsel %vm45, 1.0, 0
    %49 = vmatpush.msra.mxu0 0.0
    %50 = vmatpush.msra.mxu0 0.0
    %51 = vmatpush.msra.mxu0 0.0
    %52 = vmatpush.msra.mxu0 0.0
    %53 = vmatpush.msra.mxu0 0.0
    %54 = vmatpush.msra.mxu0 0.0
    %55 = vmatpush.msra.mxu0 0.0
    %56 = vmatpush.msra.mxu0 0.0
    %57 = vmatpush.msra.mxu0 0.0
    %58 = vmatpush.msra.mxu0 0.0
    %59 = vmatpush.msra.mxu0 0.0
    %60 = vmatpush.msra.mxu0 0.0
    %61 = vmatpush.msra.mxu0 0.0
    %62 = vmatpush.msra.mxu0 0.0
    %63 = vmatpush.msra.mxu0 0.0
    %64 = vmatpush.msra.mxu0 %v43
    %65 = vmatmul.f32.gmra.mxu0 %v47
    %v66 = vpop.f32.mrf.mxu0
    %v67 = vadd.f32 0.0, %v66
    %68 = vdwg.mxu0
    %69 = vmatpush.msra.mxu0 0.0
    %70 = vmatpush.msra.mxu0 0.0
    %71 = vmatpush.msra.mxu0 0.0
    %72 = vmatpush.msra.mxu0 0.0
    %73 = vmatpush.msra.mxu0 0.0
    %74 = vmatpush.msra.mxu0 0.0
    %75 = vmatpush.msra.mxu0 0.0
    %76 = vmatpush.msra.mxu0 0.0
    %77 = vmatpush.msra.mxu0 0.0
    %78 = vmatpush.msra.mxu0 0.0
    %79 = vmatpush.msra.mxu0 0.0
    %80 = vmatpush.msra.mxu0 0.0
    %81 = vmatpush.msra.mxu0 0.0
    %82 = vmatpush.msra.mxu0 0.0
    %83 = vmatpush.msra.mxu0 0.0
    %84 = vmatpush.msra.mxu0 %v44
    %85 = vmatmul.f32.gmra.mxu0 %v47
    %v86 = vpop.f32.mrf.mxu0
    %v87 = vadd.f32 0.0, %v86
    %88 = vdwg.mxu0
    %v89 = vld [vmem:[#allocation2] sm:$0x3]
    %v90 = vmul.f32 %v67, %v42
    %v91 = vmul.f32 %v87, %v42
    %vm92 = vcmask 253952
    %v93 = vsel %vm92, %v90, 0.0
    %94 = vadd.xlane.f32.xlu0 %v93
    %v95 = vpop.xlane.xlu0 %94
    %v96 = vsel %vm92, %v91, 0.0
    %97 = vadd.xlane.f32.xlu0 %v96
    %v98 = vpop.xlane.xlu0 %97
    %v101 = vrot.slane %v98, 7
    %vm102 = vcmask 1041409
    %v103 = vsel %vm102, %v101, %v95
    %v105 = vadd.f32 %v89, %v103
    %vm106 = vcmask 1024
    %107 = vst.msk [vmem:[#allocation2] sm:$0x3] %vm106, %v105
    // Predicated region
    $region26: #{tpu_custom_call.1} parent=1 // pred_check
      %p108 = pneg %p36
    $region27: #{tpu_custom_call.1} parent=1 // pred_check_branch
      %110 = sbr.rel (%p108) target = $region29
    $region28: #{tpu_custom_call.1} parent=1 // pred_region
      %v111 = vld [vmem:[#allocation2] sm:$0x3]
      %s112 = sld [smem:[#allocation3]]
      %v113 = vstv %s112
      %v114 = vadd.f32 %v111, %v113
      %v115 = vxor.u32 %v114, 2147483648
      %v116 = vmul.f32 %v115, 1.442695
      %v117 = vpow.pop %v116
      %v118 = vadd.f32 %v117, 1.0
      %v119 = vrcp.pop %v118
      %v120 = vmul.f32 %v118, %v119
      %v121 = vsub.f32 1.0, %v120
      %v122 = vmul.f32 %v119, %v121
      %v123 = vadd.f32 %v119, %v122
      %vm124 = vweird.f32 %v118
      %vm125 = vweird.f32 %v119
      %vm126 = vmor %vm124, %vm125
      %v127 = vsel %vm126, %v119, %v123
      %v128 = vand.u32 2147483647, %v118
      %vm129 = vcmp.eq.f32.partialorder %v128, 8.507059e+37
      %v130 = vand.u32 %v118, 2147483648
      %v131 = vor.u32 1.1754944e-38, %v130
      %v132 = vsel %vm129, %v131, %v127
      %v133 = vmul.f32 1.0, %v132
      %134 = vst.msk [vmem:[%s4] sm:$0x3] %vm106, %v133
      %v135 = vld [vmem:[%s3] sm:$0x3]
      %v136 = vmax.f32 %v133, 0.0
      %v137 = vmul.f32 %v133, %v135
      %v138 = vsub.f32 %v136, %v137
      %v139 = vand.u32 2147483647, %v133
      %v140 = vsub.f32 0.0, %v139
      %v141 = vmul.f32 %v140, 1.442695
      %v142 = vpow.pop %v141
      %v143 = vadd.f32 %v142, 1.0
      %v144 = vlog2.pop %v143
      %v145 = vmul.f32 %v144, 0.6931472
      %v146 = vmul.f32 -0.5, %v142
      %v147 = vadd.f32 %v146, 1.0
      %v148 = vmul.f32 %v147, %v142
      %v149 = vand.u32 2147483647, %v142
      %vm150 = vcmp.lt.f32.partialorder %v149, 0.0004427343
      %v151 = vsel %vm150, %v148, %v145
      %v152 = vadd.f32 %v138, %v151
      %153 = vst.msk [vmem:[%s5] sm:$0x3] %vm106, %v152
    $region29: #{tpu_custom_call.1} parent=1 // pred_fallthru
      _
    // Predicated region
    $region30: #{tpu_custom_call.1} parent=1 // pred_check
      _
    $region31: #{tpu_custom_call.1} parent=1 // pred_check_branch
      %155 = sbr.rel (0) target = $region33
    $region32: #{tpu_custom_call.1} parent=1 // pred_region
      _
    $region33: #{tpu_custom_call.1} parent=1 // pred_fallthru
      _
    // Predicated region
    $region34: #{tpu_custom_call.1} parent=1 // pred_check
      _
    $region35: #{tpu_custom_call.1} parent=1 // pred_check_branch
      %157 = sbr.rel (0) target = $region37
    $region36: #{tpu_custom_call.1} parent=1 // pred_region
      _
    $region37: #{tpu_custom_call.1} parent=1 // pred_fallthru
      _
    // Predicated region
    $region38: #{tpu_custom_call.1} parent=1 // pred_check
      _
    $region39: #{tpu_custom_call.1} parent=1 // pred_check_branch
      %159 = sbr.rel (0) target = $region41
    $region40: #{tpu_custom_call.1} parent=1 // pred_region
      _
    $region41: #{tpu_custom_call.1} parent=1 // pred_fallthru
      _
    // Predicated region
    $region42: #{tpu_custom_call.1} parent=1 // pred_check
      _
    $region43: #{tpu_custom_call.1} parent=1 // pred_check_branch
      %161 = sbr.rel (0) target = $region45
    $region44: #{tpu_custom_call.1} parent=1 // pred_region
      _
    $region45: #{tpu_custom_call.1} parent=1 // pred_fallthru
      _
    %162 = vsyncpa [#allocation5], 1

</llo_original>
